<compile_context>
chip_gen: v6e
topology: v6e:2x2x1
jax: 0.10.0
libtpu: 0.0.40
codegen_flags: <defaults>
</compile_context>

<pallas_src>
import jax
import jax.numpy as jnp
from jax.experimental import pallas as pl
from jax.experimental.pallas import tpu as pltpu


def mlp_kernel(x_ref,
               w1_ref, b1_ref,
               w2_ref, b2_ref,
               w3_ref, b3_ref,
               w4_ref, b4_ref,
               o_ref):
    x = x_ref[...]                                          # (1, TB)  batch on lanes

    # Layer 1: Linear(1, H) + ReLU.  K=1 contraction -> broadcast FMA on the VPU
    # (outer product of the (H,1) weight column with the (1,TB) batch row); no MXU trip.
    h = jnp.maximum(w1_ref[...] * x + b1_ref[...], 0.0)     # (H_pad, TB)

    # Layers 2/3: Linear(H, H) + ReLU on the MXU; W kept in PyTorch (out,in) layout.
    h = jnp.maximum(
        jnp.dot(w2_ref[...], h, preferred_element_type=jnp.float32) + b2_ref[...], 0.0)
    h = jnp.maximum(
        jnp.dot(w3_ref[...], h, preferred_element_type=jnp.float32) + b3_ref[...], 0.0)

    # Layer 4: Linear(H, 1).  N=1 -> scaled-row sum (VPU mul + XLU sublane reduce),
    # written straight into the lane-dense (1, TB) output row (unmasked store).
    o_ref[...] = jnp.sum(w4_ref[...] * h, axis=0, keepdims=True) + b4_ref[...]


def mlp_forward(x, params, *, tb=512):
    """x: (B, 1) f32 (PyTorch Linear contract).  params: PyTorch-layout weights/biases."""
    B = x.shape[0]
    H = params["w2"].shape[0]
    H_pad = ((H + 7) // 8) * 8          # sublane-align the hidden dim (10 -> 16)

    def pad_rows(a, n):
        return jnp.pad(a, ((0, n - a.shape[0]),) + ((0, 0),) * (a.ndim - 1))

    # Layout glue (trace-time only): weights in (out,in), biases as (out,1) columns that
    # broadcast over the lane/batch axis for free; zero-pad hidden dim once.
    w1 = pad_rows(params["w1"], H_pad)                              # (H_pad, 1)
    b1 = pad_rows(params["b1"].reshape(-1, 1), H_pad)               # (H_pad, 1)
    w2 = jnp.pad(params["w2"], ((0, H_pad - H), (0, H_pad - H)))    # (H_pad, H_pad)
    b2 = pad_rows(params["b2"].reshape(-1, 1), H_pad)
    w3 = jnp.pad(params["w3"], ((0, H_pad - H), (0, H_pad - H)))
    b3 = pad_rows(params["b3"].reshape(-1, 1), H_pad)
    w4 = pad_rows(params["w4"].T, H_pad)                            # (H_pad, 1)
    b4 = params["b4"].reshape(1, 1)                                 # (1, 1)

    # Batch on lanes: x -> (1, B), padded to a multiple of the lane tile TB (>=128).
    TB = min(tb, ((min(B, tb) + 127) // 128) * 128)
    B_pad = pl.cdiv(B, TB) * TB
    x_t = jnp.pad(x.astype(jnp.float32).T, ((0, 0), (0, B_pad - B)))  # (1, B_pad)

    resident = lambda a: pl.BlockSpec(a.shape, lambda i, _n=a.ndim: (0,) * _n)

    out = pl.pallas_call(
        mlp_kernel,
        out_shape=jax.ShapeDtypeStruct((1, B_pad), jnp.float32),
        grid=(B_pad // TB,),
        in_specs=[pl.BlockSpec((1, TB), lambda i: (0, i)),
                  resident(w1), resident(b1),
                  resident(w2), resident(b2),
                  resident(w3), resident(b3),
                  resident(w4), resident(b4)],
        out_specs=pl.BlockSpec((1, TB), lambda i: (0, i)),
        compiler_params=pltpu.CompilerParams(
            dimension_semantics=("parallel",)),   # v7x: shard batch tiles across 2 TCs
    )(x_t, w1, b1, w2, b2, w3, b3, w4, b4)

    return out[:, :B].T                                             # (B, 1)


def init_params(key, hidden=10):
    """Deterministic init mimicking PyTorch nn.Linear default (U[-1/sqrt(fan_in), +])."""
    def linear_init(k, fan_in, fan_out):
        kw, kb = jax.random.split(k)
        bound = 1.0 / jnp.sqrt(float(fan_in))
        w = jax.random.uniform(kw, (fan_out, fan_in), jnp.float32, -bound, bound)
        b = jax.random.uniform(kb, (fan_out,), jnp.float32, -bound, bound)
        return w, b

    k1, k2, k3, k4 = jax.random.split(key, 4)
    w1, b1 = linear_init(k1, 1, hidden)
    w2, b2 = linear_init(k2, hidden, hidden)
    w3, b3 = linear_init(k3, hidden, hidden)
    w4, b4 = linear_init(k4, hidden, 1)
    return {"w1": w1, "b1": b1, "w2": w2, "b2": b2,
            "w3": w3, "b3": b3, "w4": w4, "b4": b4}


def reference_forward(x, params):
    """Pure-JAX reference (PyTorch semantics) for correctness check."""
    h = jnp.maximum(x @ params["w1"].T + params["b1"], 0.0)
    h = jnp.maximum(h @ params["w2"].T + params["b2"], 0.0)
    h = jnp.maximum(h @ params["w3"].T + params["b3"], 0.0)
    return h @ params["w4"].T + params["b4"]


if __name__ == "__main__":
    key = jax.random.PRNGKey(0)
    kx, kp = jax.random.split(key)

    batch = 8
    x = jax.random.normal(kx, (batch, 1), jnp.float32)   # Linear(1, ...) input contract
    params = init_params(kp, hidden=10)

    out = mlp_forward(x, params)
    out = jax.block_until_ready(out)

    ref = reference_forward(x, params)
    assert out.shape == (batch, 1)
    assert jnp.allclose(out, ref, atol=1e-4, rtol=1e-4), (out, ref)

    print("KERNEL_OK")
</pallas_src>

<mosaic_0001>
module attributes {stable_mosaic.version = 11 : i64} {
  func.func @mlp_kernel(%arg0: i32, %arg1: memref<1x128xf32, #tpu.memory_space<vmem>>, %arg2: memref<16x1xf32, #tpu.memory_space<vmem>>, %arg3: memref<16x1xf32, #tpu.memory_space<vmem>>, %arg4: memref<16x16xf32, #tpu.memory_space<vmem>>, %arg5: memref<16x1xf32, #tpu.memory_space<vmem>>, %arg6: memref<16x16xf32, #tpu.memory_space<vmem>>, %arg7: memref<16x1xf32, #tpu.memory_space<vmem>>, %arg8: memref<16x1xf32, #tpu.memory_space<vmem>>, %arg9: memref<1x1xf32, #tpu.memory_space<vmem>>, %arg10: memref<1x128xf32, #tpu.memory_space<vmem>>) attributes {dimension_semantics = [#tpu.dimension_semantics<parallel>], iteration_bounds = array<i64: 1>, scalar_prefetch = 0 : i64, scratch_operands = 0 : i64, tpu.core_type = #tpu.core_type<tc>, window_params = [{transform_indices = @transform_0, window_bounds = array<i64: 1, 128>}, {pipeline_mode = #tpu.pipeline_mode<synchronous>, transform_indices = @transform_1, window_bounds = array<i64: 16, 1>}, {pipeline_mode = #tpu.pipeline_mode<synchronous>, transform_indices = @transform_2, window_bounds = array<i64: 16, 1>}, {pipeline_mode = #tpu.pipeline_mode<synchronous>, transform_indices = @transform_3, window_bounds = array<i64: 16, 16>}, {pipeline_mode = #tpu.pipeline_mode<synchronous>, transform_indices = @transform_4, window_bounds = array<i64: 16, 1>}, {pipeline_mode = #tpu.pipeline_mode<synchronous>, transform_indices = @transform_5, window_bounds = array<i64: 16, 16>}, {pipeline_mode = #tpu.pipeline_mode<synchronous>, transform_indices = @transform_6, window_bounds = array<i64: 16, 1>}, {pipeline_mode = #tpu.pipeline_mode<synchronous>, transform_indices = @transform_7, window_bounds = array<i64: 16, 1>}, {pipeline_mode = #tpu.pipeline_mode<synchronous>, transform_indices = @transform_8, window_bounds = array<i64: 1, 1>}, {transform_indices = @transform_9, window_bounds = array<i64: 1, 128>}]} {
    %c0 = arith.constant 0 : index
    %c0_0 = arith.constant 0 : index
    %0 = vector.load %arg1[%c0, %c0_0] : memref<1x128xf32, #tpu.memory_space<vmem>>, vector<1x128xf32>
    %c0_1 = arith.constant 0 : index
    %c0_2 = arith.constant 0 : index
    %1 = vector.load %arg2[%c0_1, %c0_2] : memref<16x1xf32, #tpu.memory_space<vmem>>, vector<16x1xf32>
    %2 = vector.broadcast %1 : vector<16x1xf32> to vector<16x128xf32>
    %3 = vector.broadcast %0 : vector<1x128xf32> to vector<16x128xf32>
    %4 = arith.mulf %2, %3 : vector<16x128xf32>
    %c0_3 = arith.constant 0 : index
    %c0_4 = arith.constant 0 : index
    %5 = vector.load %arg3[%c0_3, %c0_4] : memref<16x1xf32, #tpu.memory_space<vmem>>, vector<16x1xf32>
    %6 = vector.broadcast %5 : vector<16x1xf32> to vector<16x128xf32>
    %7 = arith.addf %4, %6 : vector<16x128xf32>
    %cst = arith.constant 0.000000e+00 : f32
    %8 = vector.broadcast %cst : f32 to vector<16x128xf32>
    %9 = arith.maximumf %7, %8 : vector<16x128xf32>
    %c0_5 = arith.constant 0 : index
    %c0_6 = arith.constant 0 : index
    %10 = vector.load %arg4[%c0_5, %c0_6] : memref<16x16xf32, #tpu.memory_space<vmem>>, vector<16x16xf32>
    %cst_7 = arith.constant dense<0.000000e+00> : vector<16x128xf32>
    %11 = tpu.matmul %10, %9, %cst_7 {dimension_numbers = #tpu.dot_dimension_numbers<[1], [0], [0], [1], [0, 0, 1, 1], [], []>} : vector<16x16xf32>, vector<16x128xf32>, vector<16x128xf32> -> vector<16x128xf32>
    %c0_8 = arith.constant 0 : index
    %c0_9 = arith.constant 0 : index
    %12 = vector.load %arg5[%c0_8, %c0_9] : memref<16x1xf32, #tpu.memory_space<vmem>>, vector<16x1xf32>
    %13 = vector.broadcast %12 : vector<16x1xf32> to vector<16x128xf32>
    %14 = arith.addf %11, %13 : vector<16x128xf32>
    %cst_10 = arith.constant 0.000000e+00 : f32
    %15 = vector.broadcast %cst_10 : f32 to vector<16x128xf32>
    %16 = arith.maximumf %14, %15 : vector<16x128xf32>
    %c0_11 = arith.constant 0 : index
    %c0_12 = arith.constant 0 : index
    %17 = vector.load %arg6[%c0_11, %c0_12] : memref<16x16xf32, #tpu.memory_space<vmem>>, vector<16x16xf32>
    %cst_13 = arith.constant dense<0.000000e+00> : vector<16x128xf32>
    %18 = tpu.matmul %17, %16, %cst_13 {dimension_numbers = #tpu.dot_dimension_numbers<[1], [0], [0], [1], [0, 0, 1, 1], [], []>} : vector<16x16xf32>, vector<16x128xf32>, vector<16x128xf32> -> vector<16x128xf32>
    %c0_14 = arith.constant 0 : index
    %c0_15 = arith.constant 0 : index
    %19 = vector.load %arg7[%c0_14, %c0_15] : memref<16x1xf32, #tpu.memory_space<vmem>>, vector<16x1xf32>
    %20 = vector.broadcast %19 : vector<16x1xf32> to vector<16x128xf32>
    %21 = arith.addf %18, %20 : vector<16x128xf32>
    %cst_16 = arith.constant 0.000000e+00 : f32
    %22 = vector.broadcast %cst_16 : f32 to vector<16x128xf32>
    %23 = arith.maximumf %21, %22 : vector<16x128xf32>
    %c0_17 = arith.constant 0 : index
    %c0_18 = arith.constant 0 : index
    %24 = vector.load %arg8[%c0_17, %c0_18] : memref<16x1xf32, #tpu.memory_space<vmem>>, vector<16x1xf32>
    %25 = vector.broadcast %24 : vector<16x1xf32> to vector<16x128xf32>
    %26 = arith.mulf %25, %23 : vector<16x128xf32>
    %cst_19 = arith.constant dense<0.000000e+00> : vector<128xf32>
    %27 = vector.multi_reduction <add>, %26, %cst_19 [0] : vector<16x128xf32> to vector<128xf32>
    %28 = vector.shape_cast %27 : vector<128xf32> to vector<1x128xf32>
    %c0_20 = arith.constant 0 : index
    %c0_21 = arith.constant 0 : index
    %29 = vector.load %arg9[%c0_20, %c0_21] : memref<1x1xf32, #tpu.memory_space<vmem>>, vector<1x1xf32>
    %30 = vector.broadcast %29 : vector<1x1xf32> to vector<1x128xf32>
    %31 = arith.addf %28, %30 : vector<1x128xf32>
    %c0_22 = arith.constant 0 : index
    %c0_23 = arith.constant 0 : index
    %32 = vector.load %arg10[%c0_22, %c0_23] : memref<1x128xf32, #tpu.memory_space<vmem>>, vector<1x128xf32>
    tpu.vector_store %arg10[%c0_22, %c0_23], %31 {strides = array<i32>} : memref<1x128xf32, #tpu.memory_space<vmem>>, vector<1x128xf32>,
    return
  }
  func.func @transform_0(%arg0: i32) -> (i32, i32) {
    %c0_i32 = arith.constant 0 : i32
    %c0_i32_0 = arith.constant 0 : i32
    return %c0_i32, %arg0 : i32, i32
  }
  func.func @transform_1(%arg0: i32) -> (i32, i32) {
    %c0_i32 = arith.constant 0 : i32
    %c0_i32_0 = arith.constant 0 : i32
    %c0_i32_1 = arith.constant 0 : i32
    return %c0_i32, %c0_i32_0 : i32, i32
  }
  func.func @transform_2(%arg0: i32) -> (i32, i32) {
    %c0_i32 = arith.constant 0 : i32
    %c0_i32_0 = arith.constant 0 : i32
    %c0_i32_1 = arith.constant 0 : i32
    return %c0_i32, %c0_i32_0 : i32, i32
  }
  func.func @transform_3(%arg0: i32) -> (i32, i32) {
    %c0_i32 = arith.constant 0 : i32
    %c0_i32_0 = arith.constant 0 : i32
    %c0_i32_1 = arith.constant 0 : i32
    return %c0_i32, %c0_i32_0 : i32, i32
  }
  func.func @transform_4(%arg0: i32) -> (i32, i32) {
    %c0_i32 = arith.constant 0 : i32
    %c0_i32_0 = arith.constant 0 : i32
    %c0_i32_1 = arith.constant 0 : i32
    return %c0_i32, %c0_i32_0 : i32, i32
  }
  func.func @transform_5(%arg0: i32) -> (i32, i32) {
    %c0_i32 = arith.constant 0 : i32
    %c0_i32_0 = arith.constant 0 : i32
    %c0_i32_1 = arith.constant 0 : i32
    return %c0_i32, %c0_i32_0 : i32, i32
  }
  func.func @transform_6(%arg0: i32) -> (i32, i32) {
    %c0_i32 = arith.constant 0 : i32
    %c0_i32_0 = arith.constant 0 : i32
    %c0_i32_1 = arith.constant 0 : i32
    return %c0_i32, %c0_i32_0 : i32, i32
  }
  func.func @transform_7(%arg0: i32) -> (i32, i32) {
    %c0_i32 = arith.constant 0 : i32
    %c0_i32_0 = arith.constant 0 : i32
    %c0_i32_1 = arith.constant 0 : i32
    return %c0_i32, %c0_i32_0 : i32, i32
  }
  func.func @transform_8(%arg0: i32) -> (i32, i32) {
    %c0_i32 = arith.constant 0 : i32
    %c0_i32_0 = arith.constant 0 : i32
    %c0_i32_1 = arith.constant 0 : i32
    return %c0_i32, %c0_i32_0 : i32, i32
  }
  func.func @transform_9(%arg0: i32) -> (i32, i32) {
    %c0_i32 = arith.constant 0 : i32
    %c0_i32_0 = arith.constant 0 : i32
    return %c0_i32, %arg0 : i32, i32
  }
}

</mosaic_0001>

<llo_original>
// kernel: tpu_custom_call.1
$region0: #{tpu_custom_call.1}
  #allocation0 [shape = 'u32[]', space=smem, size = 0x4, offset = 0x4, fixed_abs, tag = 'smem constant byte address 0x4 - core index']
  #allocation1 [shape = 'u32[144,128]{1,0:T(1,128)}', space=vmem, size = 0x12000, scoped, tag = 'internal scratch']
  #allocation2 [shape = 'f32[1,1]{1,0:T(1,128)S(1)}', space=vmem, size = 0x200, scoped, tag = 'scoped memory for tpu_custom_call.1']
  %s0 = inlined_call_operand.vmem [shape: f32[1,128], index: 0, kind: input, shape index: {}]
  %s1 = inlined_call_operand.vmem [shape: f32[16,1], index: 1, kind: input, shape index: {}]
  %s2 = inlined_call_operand.vmem [shape: f32[16,1], index: 2, kind: input, shape index: {}]
  %s3 = inlined_call_operand.vmem [shape: f32[16,16], index: 3, kind: input, shape index: {}]
  %s4 = inlined_call_operand.vmem [shape: f32[16,1], index: 4, kind: input, shape index: {}]
  %s5 = inlined_call_operand.vmem [shape: f32[16,16], index: 5, kind: input, shape index: {}]
  %s6 = inlined_call_operand.vmem [shape: f32[16,1], index: 6, kind: input, shape index: {}]
  %s7 = inlined_call_operand.vmem [shape: f32[16,1], index: 7, kind: input, shape index: {}]
  %s8 = inlined_call_operand.<no memory space> [shape: f32[1,1], index: 8, kind: input, shape index: {}]
  %s9 = inlined_call_operand.hbm [shape: f32[1,128], index: 9, kind: output, shape index: {}]
  %s10 = sld [smem:[#allocation0]]
  $region46: #{tpu_custom_call.1} parent=0
    _
  %s12 = ssub.s32 1, %s10
  %s13 = scalar_select 0, %s12, %s10
  %v14 = vstv %s8
  %15 = vst [vmem:[#allocation2] sm:$0x1] %v14
  $region1: #{tpu_custom_call.1} parent=0
    #allocation3 [shape = 'u8[512]{0}', space=vmem, size = 0x400, scoped, tag = 'output window, operand 0, single buffered']
    #allocation4 [shape = 's32[1]{0}', space=sflag, size = 0x4, scoped, tag = 'scoped memory for tpu_custom_call.1']
    %16 = vsyncpa [#allocation4], 0
    // Predicated region
    $region2: #{tpu_custom_call.1} parent=1 // pred_check
      _
    $region3: #{tpu_custom_call.1} parent=1 // pred_check_branch
      %18 = sbr.rel (0) target = $region5
    $region4: #{tpu_custom_call.1} parent=1 // pred_region
      _
    $region5: #{tpu_custom_call.1} parent=1 // pred_fallthru
      _
    // Predicated region
    $region6: #{tpu_custom_call.1} parent=1 // pred_check
      _
    $region7: #{tpu_custom_call.1} parent=1 // pred_check_branch
      %20 = sbr.rel (0) target = $region9
    $region8: #{tpu_custom_call.1} parent=1 // pred_region
      _
    $region9: #{tpu_custom_call.1} parent=1 // pred_fallthru
      _
    // Predicated region
    $region10: #{tpu_custom_call.1} parent=1 // pred_check
      _
    $region11: #{tpu_custom_call.1} parent=1 // pred_check_branch
      %22 = sbr.rel (0) target = $region13
    $region12: #{tpu_custom_call.1} parent=1 // pred_region
      _
    $region13: #{tpu_custom_call.1} parent=1 // pred_fallthru
      _
    // Predicated region
    $region14: #{tpu_custom_call.1} parent=1 // pred_check
      _
    $region15: #{tpu_custom_call.1} parent=1 // pred_check_branch
      %24 = sbr.rel (0) target = $region17
    $region16: #{tpu_custom_call.1} parent=1 // pred_region
      _
    $region17: #{tpu_custom_call.1} parent=1 // pred_fallthru
      _
    // Predicated region
    $region18: #{tpu_custom_call.1} parent=1 // pred_check
      _
    $region19: #{tpu_custom_call.1} parent=1 // pred_check_branch
      %26 = sbr.rel (0) target = $region21
    $region20: #{tpu_custom_call.1} parent=1 // pred_region
      _
    $region21: #{tpu_custom_call.1} parent=1 // pred_fallthru
      _
    // Predicated region
    $region22: #{tpu_custom_call.1} parent=1 // pred_check
      _
    $region23: #{tpu_custom_call.1} parent=1 // pred_check_branch
      %28 = sbr.rel (0) target = $region25
    $region24: #{tpu_custom_call.1} parent=1 // pred_region
      _
    $region25: #{tpu_custom_call.1} parent=1 // pred_fallthru
      _
    // Predicated region
    $region26: #{tpu_custom_call.1} parent=1 // pred_check
      _
    $region27: #{tpu_custom_call.1} parent=1 // pred_check_branch
      %30 = sbr.rel (0) target = $region29
    $region28: #{tpu_custom_call.1} parent=1 // pred_region
      _
    $region29: #{tpu_custom_call.1} parent=1 // pred_fallthru
      _
    // Predicated region
    $region30: #{tpu_custom_call.1} parent=1 // pred_check
      _
    $region31: #{tpu_custom_call.1} parent=1 // pred_check_branch
      %32 = sbr.rel (0) target = $region33
    $region32: #{tpu_custom_call.1} parent=1 // pred_region
      _
    $region33: #{tpu_custom_call.1} parent=1 // pred_fallthru
      _
    // Predicated region
    $region34: #{tpu_custom_call.1} parent=1 // pred_check
      _
    $region35: #{tpu_custom_call.1} parent=1 // pred_check_branch
      %34 = sbr.rel (0) target = $region37
    $region36: #{tpu_custom_call.1} parent=1 // pred_region
      _
    $region37: #{tpu_custom_call.1} parent=1 // pred_fallthru
      _
    %v35 = vld [vmem:[%s0] sm:$0x1]
    %v36 = vld [vmem:[%s1] sm:$0xff]
    %v37 = vld [vmem:[%s1 + $0x8] sm:$0xff]
    %39 = vset.pattern.permute.xlu0 0
    %40 = vperm.xlu0 %39, %v36
    %v41 = vpop.permute.xlu0 %40
    %44 = vset.pattern.permute.xlu0 0
    %45 = vperm.xlu0 %44, %v37
    %v46 = vpop.permute.xlu0 %45
    %v49 = vlaneseq
    %v50 = vshrl.u32 %v49, 7
    %v51 = vsub.s32 0, %v50
    %v52 = vrot.slane %v35, %v51
    %v54 = vmul.f32 %v41, %v52
    %v55 = vmul.f32 %v46, %v52
    %v56 = vld [vmem:[%s2] sm:$0xff]
    %v57 = vld [vmem:[%s2 + $0x8] sm:$0xff]
    %59 = vset.pattern.permute.xlu0 0
    %60 = vperm.xlu0 %59, %v56
    %v61 = vpop.permute.xlu0 %60
    %64 = vset.pattern.permute.xlu0 0
    %65 = vperm.xlu0 %64, %v57
    %v66 = vpop.permute.xlu0 %65
    %v68 = vadd.f32 %v54, %v61
    %v69 = vadd.f32 %v55, %v66
    %v70 = vmax.f32 %v68, 0.0
    %v71 = vmax.f32 %v69, 0.0
    %v72 = vld [vmem:[%s3] sm:$0xff]
    %v73 = vld [vmem:[%s3 + $0x8] sm:$0xff]
    %v74 = vld [vmem:[%s4] sm:$0xff]
    %v75 = vld [vmem:[%s4 + $0x8] sm:$0xff]
    %77 = vset.pattern.permute.xlu0 0
    %78 = vperm.xlu0 %77, %v74
    %v79 = vpop.permute.xlu0 %78
    %82 = vset.pattern.permute.xlu0 0
    %83 = vperm.xlu0 %82, %v75
    %v84 = vpop.permute.xlu0 %83
    %vm86 = vcmask 130048
    %v88 = vsel %vm86, %v72, 0
    %v91 = vsel %vm86, %v73, 0
    %93 = vmatprep.subr.mxu0 0.0
    %94 = vmatpush1.msra.mxu0 0.0
    %95 = vmatprep.subr.mxu0 0.0
    %96 = vmatpush1.msra.mxu0 0.0
    %97 = vmatprep.subr.mxu0 0.0
    %98 = vmatpush1.msra.mxu0 0.0
    %99 = vmatprep.subr.mxu0 0.0
    %100 = vmatpush1.msra.mxu0 0.0
    %101 = vmatprep.subr.mxu0 0.0
    %102 = vmatpush1.msra.mxu0 0.0
    %103 = vmatprep.subr.mxu0 0.0
    %104 = vmatpush1.msra.mxu0 0.0
    %105 = vmatprep.subr.mxu0 0.0
    %106 = vmatpush1.msra.mxu0 0.0
    %107 = vmatprep.subr.mxu0 0.0
    %108 = vmatpush1.msra.mxu0 0.0
    %109 = vmatprep.subr.mxu0 0.0
    %110 = vmatpush1.msra.mxu0 0.0
    %111 = vmatprep.subr.mxu0 0.0
    %112 = vmatpush1.msra.mxu0 0.0
    %113 = vmatprep.subr.mxu0 0.0
    %114 = vmatpush1.msra.mxu0 0.0
    %115 = vmatprep.subr.mxu0 0.0
    %116 = vmatpush1.msra.mxu0 0.0
    %117 = vmatprep.subr.mxu0 0.0
    %118 = vmatpush1.msra.mxu0 0.0
    %119 = vmatprep.subr.mxu0 0.0
    %120 = vmatpush1.msra.mxu0 0.0
    %121 = vmatprep.subr.mxu0 0.0
    %122 = vmatpush1.msra.mxu0 %v71
    %123 = vmatprep.subr.mxu0 0.0
    %124 = vmatpush1.msra.mxu0 %v70
    %125 = vmatprep.subr.mxu0 0.0
    %126 = vmatpush2.msra.mxu0 0.0
    %127 = vmatprep.subr.mxu0 0.0
    %128 = vmatpush2.msra.mxu0 0.0
    %129 = vmatprep.subr.mxu0 0.0
    %130 = vmatpush2.msra.mxu0 0.0
    %131 = vmatprep.subr.mxu0 0.0
    %132 = vmatpush2.msra.mxu0 0.0
    %133 = vmatprep.subr.mxu0 0.0
    %134 = vmatpush2.msra.mxu0 0.0
    %135 = vmatprep.subr.mxu0 0.0
    %136 = vmatpush2.msra.mxu0 0.0
    %137 = vmatprep.subr.mxu0 0.0
    %138 = vmatpush2.msra.mxu0 0.0
    %139 = vmatprep.subr.mxu0 0.0
    %140 = vmatpush2.msra.mxu0 0.0
    %141 = vmatprep.subr.mxu0 0.0
    %142 = vmatpush2.msra.mxu0 0.0
    %143 = vmatprep.subr.mxu0 0.0
    %144 = vmatpush2.msra.mxu0 0.0
    %145 = vmatprep.subr.mxu0 0.0
    %146 = vmatpush2.msra.mxu0 0.0
    %147 = vmatprep.subr.mxu0 0.0
    %148 = vmatpush2.msra.mxu0 0.0
    %149 = vmatprep.subr.mxu0 0.0
    %150 = vmatpush2.msra.mxu0 0.0
    %151 = vmatprep.subr.mxu0 0.0
    %152 = vmatpush2.msra.mxu0 0.0
    %153 = vmatprep.subr.mxu0 0.0
    %154 = vmatpush2.msra.mxu0 0.0
    %155 = vmatprep.subr.mxu0 0.0
    %156 = vmatpush2.msra.mxu0 0.0
    %157 = vmatprep.mubr.f32.mxu0 0.0
    %158 = vmatmul.mubr.f32.gmra.mxu0 %v88
    %v159 = vpop.f32.mrf.mxu0
    %v160 = vadd.f32 %v79, %v159
    %v161 = vpop.f32.mrf.mxu0
    %162 = vmatprep.mubr.f32.mxu0 0.0
    %163 = vmatmul.mubr.f32.gmra.mxu0 %v91
    %v164 = vpop.f32.mrf.mxu0
    %v165 = vadd.f32 %v84, %v164
    %v166 = vpop.f32.mrf.mxu0
    %167 = vdwg.mxu0
    %v168 = vmax.f32 %v160, 0.0
    %v169 = vmax.f32 %v165, 0.0
    %v170 = vld [vmem:[%s5] sm:$0xff]
    %v171 = vld [vmem:[%s5 + $0x8] sm:$0xff]
    %v172 = vld [vmem:[%s6] sm:$0xff]
    %v173 = vld [vmem:[%s6 + $0x8] sm:$0xff]
    %175 = vset.pattern.permute.xlu0 0
    %176 = vperm.xlu0 %175, %v172
    %v177 = vpop.permute.xlu0 %176
    %180 = vset.pattern.permute.xlu0 0
    %181 = vperm.xlu0 %180, %v173
    %v182 = vpop.permute.xlu0 %181
    %v185 = vsel %vm86, %v170, 0
    %v188 = vsel %vm86, %v171, 0
    %190 = vmatprep.subr.mxu0 0.0
    %191 = vmatpush1.msra.mxu0 0.0
    %192 = vmatprep.subr.mxu0 0.0
    %193 = vmatpush1.msra.mxu0 0.0
    %194 = vmatprep.subr.mxu0 0.0
    %195 = vmatpush1.msra.mxu0 0.0
    %196 = vmatprep.subr.mxu0 0.0
    %197 = vmatpush1.msra.mxu0 0.0
    %198 = vmatprep.subr.mxu0 0.0
    %199 = vmatpush1.msra.mxu0 0.0
    %200 = vmatprep.subr.mxu0 0.0
    %201 = vmatpush1.msra.mxu0 0.0
    %202 = vmatprep.subr.mxu0 0.0
    %203 = vmatpush1.msra.mxu0 0.0
    %204 = vmatprep.subr.mxu0 0.0
    %205 = vmatpush1.msra.mxu0 0.0
    %206 = vmatprep.subr.mxu0 0.0
    %207 = vmatpush1.msra.mxu0 0.0
    %208 = vmatprep.subr.mxu0 0.0
    %209 = vmatpush1.msra.mxu0 0.0
    %210 = vmatprep.subr.mxu0 0.0
    %211 = vmatpush1.msra.mxu0 0.0
    %212 = vmatprep.subr.mxu0 0.0
    %213 = vmatpush1.msra.mxu0 0.0
    %214 = vmatprep.subr.mxu0 0.0
    %215 = vmatpush1.msra.mxu0 0.0
    %216 = vmatprep.subr.mxu0 0.0
    %217 = vmatpush1.msra.mxu0 0.0
    %218 = vmatprep.subr.mxu0 0.0
    %219 = vmatpush1.msra.mxu0 %v169
    %220 = vmatprep.subr.mxu0 0.0
    %221 = vmatpush1.msra.mxu0 %v168
    %222 = vmatprep.subr.mxu0 0.0
    %223 = vmatpush2.msra.mxu0 0.0
    %224 = vmatprep.subr.mxu0 0.0
    %225 = vmatpush2.msra.mxu0 0.0
    %226 = vmatprep.subr.mxu0 0.0
    %227 = vmatpush2.msra.mxu0 0.0
    %228 = vmatprep.subr.mxu0 0.0
    %229 = vmatpush2.msra.mxu0 0.0
    %230 = vmatprep.subr.mxu0 0.0
    %231 = vmatpush2.msra.mxu0 0.0
    %232 = vmatprep.subr.mxu0 0.0
    %233 = vmatpush2.msra.mxu0 0.0
    %234 = vmatprep.subr.mxu0 0.0
    %235 = vmatpush2.msra.mxu0 0.0
    %236 = vmatprep.subr.mxu0 0.0
    %237 = vmatpush2.msra.mxu0 0.0
    %238 = vmatprep.subr.mxu0 0.0
    %239 = vmatpush2.msra.mxu0 0.0
    %240 = vmatprep.subr.mxu0 0.0
    %241 = vmatpush2.msra.mxu0 0.0
    %242 = vmatprep.subr.mxu0 0.0
    %243 = vmatpush2.msra.mxu0 0.0
    %244 = vmatprep.subr.mxu0 0.0
    %245 = vmatpush2.msra.mxu0 0.0
    %246 = vmatprep.subr.mxu0 0.0
    %247 = vmatpush2.msra.mxu0 0.0
    %248 = vmatprep.subr.mxu0 0.0
    %249 = vmatpush2.msra.mxu0 0.0
    %250 = vmatprep.subr.mxu0 0.0
    %251 = vmatpush2.msra.mxu0 0.0
    %252 = vmatprep.subr.mxu0 0.0
    %253 = vmatpush2.msra.mxu0 0.0
    %254 = vmatprep.mubr.f32.mxu0 0.0
    %255 = vmatmul.mubr.f32.gmra.mxu0 %v185
    %v256 = vpop.f32.mrf.mxu0
    %v257 = vadd.f32 %v177, %v256
    %v258 = vpop.f32.mrf.mxu0
    %259 = vmatprep.mubr.f32.mxu0 0.0
    %260 = vmatmul.mubr.f32.gmra.mxu0 %v188
    %v261 = vpop.f32.mrf.mxu0
    %v262 = vadd.f32 %v182, %v261
    %v263 = vpop.f32.mrf.mxu0
    %264 = vdwg.mxu0
    %v265 = vmax.f32 %v257, 0.0
    %v266 = vmax.f32 %v262, 0.0
    %v267 = vld [vmem:[%s7] sm:$0xff]
    %v268 = vld [vmem:[%s7 + $0x8] sm:$0xff]
    %270 = vset.pattern.permute.xlu0 0
    %271 = vperm.xlu0 %270, %v267
    %v272 = vpop.permute.xlu0 %271
    %275 = vset.pattern.permute.xlu0 0
    %276 = vperm.xlu0 %275, %v268
    %v277 = vpop.permute.xlu0 %276
    %v279 = vmul.f32 %v272, %v265
    %v280 = vmul.f32 %v277, %v266
    %v281 = vadd.f32 %v279, %v280
    %v282 = vrot.slane %v281, 4
    %v283 = vadd.f32 %v281, %v282
    %v284 = vrot.slane %v283, 2
    %v285 = vadd.f32 %v283, %v284
    %v286 = vrot.slane %v285, 1
    %v287 = vadd.f32 %v285, %v286
    %v288 = vld [vmem:[#allocation2] sm:$0x1]
    %290 = vset.pattern.permute.xlu0 0
    %291 = vperm.xlu0 %290, %v288
    %v292 = vpop.permute.xlu0 %291
    %v294 = vlaneseq
    %v295 = vshrl.u32 %v294, 7
    %v296 = vsub.s32 0, %v295
    %v297 = vrot.slane %v292, %v296
    %v298 = vadd.f32 %v287, %v297
    %299 = vst [vmem:[#allocation3] sm:$0x1] %v298
    // Predicated region
    $region38: #{tpu_custom_call.1} parent=1 // pred_check
      _
    $region39: #{tpu_custom_call.1} parent=1 // pred_check_branch
      %301 = sbr.rel (0) target = $region41
    $region40: #{tpu_custom_call.1} parent=1 // pred_region
      %s303 = ssub.s32 16, 16
      %304 = vsyncadd [#allocation4], %s303
      %s306 = sshll.u32 [#allocation3], 4
      %s307 = int_to_ptr.vmem [resolvable:$true] %s306
      %309 = dma.vmem_to_hbm [thread:$0]  %s307, 16, %s9, [#allocation4]
    $region41: #{tpu_custom_call.1} parent=1 // pred_fallthru
      _
    // Predicated region
    $region42: #{tpu_custom_call.1} parent=1 // pred_check
      _
    $region43: #{tpu_custom_call.1} parent=1 // pred_check_branch
      %311 = sbr.rel (0) target = $region45
    $region44: #{tpu_custom_call.1} parent=1 // pred_region
      %312 = dma.done [#allocation4], 16
    $region45: #{tpu_custom_call.1} parent=1 // pred_fallthru
      _
    %313 = vsyncpa [#allocation4], 1

</llo_original>
